<compile_context>
chip_gen: v7x
topology: tpu7x:2x2x1
jax: 0.10.0
libtpu: 0.0.40
codegen_flags: <defaults>
</compile_context>

<pallas_src>
import jax
import jax.numpy as jnp
from jax.experimental import pallas as pl
from jax.experimental.pallas import tpu as pltpu


_LANE_CHUNK = 512  # lanes per inner step: (8 sublanes x 512) f32 acc = 16 KiB


def _outconv_vpu_kernel(x_ref, w_ref, b_ref, o_ref):
    """Tiny-channel path: pure VPU FMAs, pixels lane-dense.

    x_ref: (NB, Cin, TP)  VMEM
    w_ref: (Cout, Cin)    VMEM (tiny, resident across the grid)
    b_ref: (Cout, 1)      VMEM
    o_ref: (NB, Cout, TP) VMEM
    """
    nb, cin, tp = x_ref.shape
    b = b_ref[...].astype(jnp.float32)                       # (Cout, 1)

    chunk = min(_LANE_CHUNK, tp)
    n_chunks = tp // chunk
    rem = tp - n_chunks * chunk

    def do_chunk(n, start, width):
        # Outer loop over ci: each x row is loaded once; each FMA fills Cout
        # sublanes of the (Cout, width) accumulator (f32 accumulation).
        acc = None
        for ci in range(cin):                                # static unroll
            w_col = w_ref[:, ci:ci + 1].astype(jnp.float32)  # (Cout, 1)
            row = x_ref[n, ci:ci + 1, pl.ds(start, width)].astype(jnp.float32)
            prod = w_col * row                               # (Cout, width)
            acc = prod if acc is None else acc + prod
        # One coalesced lane-dense store of the whole channel block.
        o_ref[n, :, pl.ds(start, width)] = (acc + b).astype(o_ref.dtype)

    for n in range(nb):                                      # NB small & static
        if n_chunks == 1:
            do_chunk(n, 0, chunk)
        else:
            def body(c, carry, n=n):
                do_chunk(n, pl.multiple_of(c * chunk, 128), chunk)
                return carry
            jax.lax.fori_loop(0, n_chunks, body, 0)
        if rem:
            do_chunk(n, n_chunks * chunk, rem)


def _outconv_mxu_kernel(x_ref, w_ref, b_ref, o_ref):
    """General path for larger channel counts: Y = W @ X on the MXU.

    x_ref: (NB, Cin, TP)  VMEM
    w_ref: (Cout, Cin)    VMEM (cast to x dtype in the wrapper)
    b_ref: (Cout, 1)      VMEM
    o_ref: (NB, Cout, TP) VMEM
    """
    nb = x_ref.shape[0]
    b = b_ref[...].astype(jnp.float32)
    # f32 inputs: HIGHEST precision to match f32 Conv2d; bf16 inputs take the
    # native bf16 MXU path (default precision) with f32 accumulation.
    prec = jax.lax.Precision.HIGHEST if x_ref.dtype == jnp.float32 else None
    for n in range(nb):                                      # NB small & static
        acc = jnp.dot(w_ref[...], x_ref[n],
                      preferred_element_type=jnp.float32, precision=prec)
        o_ref[n] = (acc + b).astype(o_ref.dtype)


def _derive_tiling(N, Cin, Cout, HW, dtype_bytes,
                   target_block_bytes=2 * 1024 * 1024,   # ~2 MiB x block/step
                   vmem_block_budget=24 * 1024 * 1024,   # 2x-buffered in+out
                   min_steps=4):                          # keep v7x's 2 TCs busy
    """Pick (batch fold NB, pixel tile TP) from a VMEM budget."""
    px_in = Cin * dtype_bytes                 # x bytes per pixel
    px_io = (Cin + Cout) * dtype_bytes        # in+out bytes per pixel

    if HW * px_in <= target_block_bytes:
        # Small image: take the whole pixel axis, fold batch elements until the
        # x block reaches ~target (bounded by N and the VMEM budget).
        tp = HW
        nb = min(N, max(1, target_block_bytes // max(1, HW * px_in)))
        nb = min(nb, max(1, vmem_block_budget // max(1, 2 * HW * px_io)))
        nb = max(1, nb)
        # Prefer >= min_steps grid steps (v7x megacore) when splitting does not
        # shrink blocks below ~512 KiB.
        while nb > 1 and -(-N // nb) < min_steps and \
                (nb // 2) * HW * px_in >= (512 << 10):
            nb //= 2
    else:
        # Large image: one batch element per step, big 128-multiple pixel tile
        # bounded by the double-buffered VMEM budget.
        nb = 1
        tp = (min(target_block_bytes // px_in,
                  vmem_block_budget // (2 * px_io)) // 128) * 128
        tp = max(128, tp)
        if tp >= HW:
            tp = HW
        else:
            while tp > 128 and N * (-(-HW // tp)) < min_steps:
                tp = max(128, (tp // 2) // 128 * 128)
    return nb, tp


def outconv_pallas(x_nchw, weight, bias):
    """1x1 Conv2d forward (PyTorch OutConv semantics).

    x_nchw : (N, Cin, H, W)
    weight : (Cout, Cin, 1, 1)   -- PyTorch Conv2d weight layout
    bias   : (Cout,)
    returns: (N, Cout, H, W)
    """
    N, Cin, H, W = x_nchw.shape
    Cout = weight.shape[0]
    HW = H * W

    # Pure reshapes (no data movement): NCHW is contiguous over H*W.
    x3 = x_nchw.reshape(N, Cin, HW)
    w_mat = weight.reshape(Cout, Cin)

    dtype_bytes = jnp.dtype(x_nchw.dtype).itemsize
    nb, tp = _derive_tiling(N, Cin, Cout, HW, dtype_bytes)
    grid = (pl.cdiv(N, nb), pl.cdiv(HW, tp))

    if Cout <= 8:
        # Segmentation-head sizes: skip the MXU entirely.
        kernel = _outconv_vpu_kernel
        w_arg = w_mat                          # f32 accumulation in-kernel
    else:
        kernel = _outconv_mxu_kernel
        w_arg = w_mat.astype(x_nchw.dtype)     # native bf16 MXU when x is bf16
    b_arg = bias.reshape(Cout, 1)

    # TODO(synk): if a v7x profile shows exposed DMA prologue after enlarging
    # tiles, sweep pipeline_mode=pl.Buffered(3) on the x/out BlockSpecs.
    out3 = pl.pallas_call(
        kernel,
        out_shape=jax.ShapeDtypeStruct((N, Cout, HW), x_nchw.dtype),
        grid_spec=pl.GridSpec(
            grid=grid,
            in_specs=[
                pl.BlockSpec((nb, Cin, tp), lambda n, p: (n, 0, p)),
                pl.BlockSpec((Cout, Cin), lambda n, p: (0, 0)),
                pl.BlockSpec((Cout, 1), lambda n, p: (0, 0)),
            ],
            out_specs=pl.BlockSpec((nb, Cout, tp), lambda n, p: (n, 0, p)),
        ),
        compiler_params=pltpu.CompilerParams(
            # No reduction axis: both grid axes are independent so v7x can
            # shard steps across its two TensorCores.
            dimension_semantics=("parallel", "parallel"),
            # Explicit ceiling: raises v5e's 16 MiB scoped default, stays well
            # inside v7x's 64 MiB physical VMEM (blocks budgeted <= ~24 MiB).
            vmem_limit_bytes=32 * 1024 * 1024),
    )(x3, w_arg, b_arg)

    return out3.reshape(N, Cout, H, W)


if __name__ == "__main__":
    key = jax.random.PRNGKey(0)

    def run_case(case_idx, N, Cin, Cout, H, W):
        k = jax.random.fold_in(key, case_idx)
        k_x, k_w, k_b = jax.random.split(k, 3)
        x = jax.random.normal(k_x, (N, Cin, H, W), dtype=jnp.float32)
        # nn.Conv2d default init: U(-1/sqrt(fan_in), 1/sqrt(fan_in)), fan_in=Cin.
        bound = 1.0 / (Cin ** 0.5)
        weight = jax.random.uniform(k_w, (Cout, Cin, 1, 1), jnp.float32,
                                    minval=-bound, maxval=bound)
        bias = jax.random.uniform(k_b, (Cout,), jnp.float32,
                                  minval=-bound, maxval=bound)

        y = jax.block_until_ready(outconv_pallas(x, weight, bias))

        # Exact elementwise f32 reference (avoids MXU-precision ambiguity).
        y_ref = (x[:, None] * weight.reshape(1, Cout, Cin, 1, 1)).sum(axis=2) \
            + bias.reshape(1, Cout, 1, 1)
        assert y.shape == (N, Cout, H, W)
        assert jnp.allclose(y, y_ref, atol=1e-5, rtol=1e-5), f"case {case_idx}"

    # 1) Small shapes consistent with the module (VPU path, batch folded).
    run_case(0, N=2, Cin=4, Cout=3, H=16, W=16)
    # 2) MXU path (Cout > 8) with HW not a multiple of 128.
    run_case(1, N=2, Cin=8, Cout=16, H=20, W=20)
    # 3) Large-HW tiled path: multiple 128-aligned pixel tiles + partial tail.
    run_case(2, N=1, Cin=4, Cout=2, H=512, W=257)

    print("KERNEL_OK")
</pallas_src>

<mosaic_0001>
module attributes {stable_mosaic.version = 11 : i64} {
  func.func @_outconv_vpu_kernel(%arg0: i32, %arg1: i32, %arg2: memref<2x4x256xf32, #tpu.memory_space<vmem>>, %arg3: memref<3x4xf32, #tpu.memory_space<vmem>>, %arg4: memref<3x1xf32, #tpu.memory_space<vmem>>, %arg5: memref<2x3x256xf32, #tpu.memory_space<vmem>>) attributes {dimension_semantics = [#tpu.dimension_semantics<parallel>, #tpu.dimension_semantics<parallel>], iteration_bounds = array<i64: 1, 1>, scalar_prefetch = 0 : i64, scratch_operands = 0 : i64, tpu.core_type = #tpu.core_type<tc>, window_params = [{transform_indices = @transform_0, window_bounds = array<i64: 2, 4, 256>}, {pipeline_mode = #tpu.pipeline_mode<synchronous>, transform_indices = @transform_1, window_bounds = array<i64: 3, 4>}, {pipeline_mode = #tpu.pipeline_mode<synchronous>, transform_indices = @transform_2, window_bounds = array<i64: 3, 1>}, {transform_indices = @transform_3, window_bounds = array<i64: 2, 3, 256>}]} {
    %c0 = arith.constant 0 : index
    %c0_0 = arith.constant 0 : index
    %0 = vector.load %arg4[%c0, %c0_0] : memref<3x1xf32, #tpu.memory_space<vmem>>, vector<3x1xf32>
    %c0_1 = arith.constant 0 : index
    %c0_2 = arith.constant 0 : index
    %1 = vector.load %arg3[%c0_1, %c0_2] : memref<3x4xf32, #tpu.memory_space<vmem>>, vector<3x1xf32>
    %c0_3 = arith.constant 0 : index
    %c0_4 = arith.constant 0 : index
    %c0_5 = arith.constant 0 : index
    %2 = vector.load %arg2[%c0_3, %c0_4, %c0_5] : memref<2x4x256xf32, #tpu.memory_space<vmem>>, vector<1x1x256xf32>
    %3 = vector.shape_cast %2 : vector<1x1x256xf32> to vector<1x256xf32>
    %4 = vector.broadcast %1 : vector<3x1xf32> to vector<3x256xf32>
    %5 = vector.broadcast %3 : vector<1x256xf32> to vector<3x256xf32>
    %6 = arith.mulf %4, %5 : vector<3x256xf32>
    %c0_6 = arith.constant 0 : index
    %c1 = arith.constant 1 : index
    %7 = vector.load %arg3[%c0_6, %c1] : memref<3x4xf32, #tpu.memory_space<vmem>>, vector<3x1xf32>
    %c0_7 = arith.constant 0 : index
    %c1_8 = arith.constant 1 : index
    %c0_9 = arith.constant 0 : index
    %8 = vector.load %arg2[%c0_7, %c1_8, %c0_9] : memref<2x4x256xf32, #tpu.memory_space<vmem>>, vector<1x1x256xf32>
    %9 = vector.shape_cast %8 : vector<1x1x256xf32> to vector<1x256xf32>
    %10 = vector.broadcast %7 : vector<3x1xf32> to vector<3x256xf32>
    %11 = vector.broadcast %9 : vector<1x256xf32> to vector<3x256xf32>
    %12 = arith.mulf %10, %11 : vector<3x256xf32>
    %13 = arith.addf %6, %12 : vector<3x256xf32>
    %c0_10 = arith.constant 0 : index
    %c2 = arith.constant 2 : index
    %14 = vector.load %arg3[%c0_10, %c2] : memref<3x4xf32, #tpu.memory_space<vmem>>, vector<3x1xf32>
    %c0_11 = arith.constant 0 : index
    %c2_12 = arith.constant 2 : index
    %c0_13 = arith.constant 0 : index
    %15 = vector.load %arg2[%c0_11, %c2_12, %c0_13] : memref<2x4x256xf32, #tpu.memory_space<vmem>>, vector<1x1x256xf32>
    %16 = vector.shape_cast %15 : vector<1x1x256xf32> to vector<1x256xf32>
    %17 = vector.broadcast %14 : vector<3x1xf32> to vector<3x256xf32>
    %18 = vector.broadcast %16 : vector<1x256xf32> to vector<3x256xf32>
    %19 = arith.mulf %17, %18 : vector<3x256xf32>
    %20 = arith.addf %13, %19 : vector<3x256xf32>
    %c0_14 = arith.constant 0 : index
    %c3 = arith.constant 3 : index
    %21 = vector.load %arg3[%c0_14, %c3] : memref<3x4xf32, #tpu.memory_space<vmem>>, vector<3x1xf32>
    %c0_15 = arith.constant 0 : index
    %c3_16 = arith.constant 3 : index
    %c0_17 = arith.constant 0 : index
    %22 = vector.load %arg2[%c0_15, %c3_16, %c0_17] : memref<2x4x256xf32, #tpu.memory_space<vmem>>, vector<1x1x256xf32>
    %23 = vector.shape_cast %22 : vector<1x1x256xf32> to vector<1x256xf32>
    %24 = vector.broadcast %21 : vector<3x1xf32> to vector<3x256xf32>
    %25 = vector.broadcast %23 : vector<1x256xf32> to vector<3x256xf32>
    %26 = arith.mulf %24, %25 : vector<3x256xf32>
    %27 = arith.addf %20, %26 : vector<3x256xf32>
    %28 = vector.broadcast %0 : vector<3x1xf32> to vector<3x256xf32>
    %29 = arith.addf %27, %28 : vector<3x256xf32>
    %c0_18 = arith.constant 0 : index
    %c0_19 = arith.constant 0 : index
    %c0_20 = arith.constant 0 : index
    %30 = vector.load %arg5[%c0_18, %c0_19, %c0_20] : memref<2x3x256xf32, #tpu.memory_space<vmem>>, vector<1x3x256xf32>
    %31 = vector.shape_cast %30 : vector<1x3x256xf32> to vector<3x256xf32>
    %32 = vector.shape_cast %29 : vector<3x256xf32> to vector<1x3x256xf32>
    tpu.vector_store %arg5[%c0_18, %c0_19, %c0_20], %32 {strides = array<i32>} : memref<2x3x256xf32, #tpu.memory_space<vmem>>, vector<1x3x256xf32>,
    %c0_21 = arith.constant 0 : index
    %c0_22 = arith.constant 0 : index
    %33 = vector.load %arg3[%c0_21, %c0_22] : memref<3x4xf32, #tpu.memory_space<vmem>>, vector<3x1xf32>
    %c1_23 = arith.constant 1 : index
    %c0_24 = arith.constant 0 : index
    %c0_25 = arith.constant 0 : index
    %34 = vector.load %arg2[%c1_23, %c0_24, %c0_25] : memref<2x4x256xf32, #tpu.memory_space<vmem>>, vector<1x1x256xf32>
    %35 = vector.shape_cast %34 : vector<1x1x256xf32> to vector<1x256xf32>
    %36 = vector.broadcast %33 : vector<3x1xf32> to vector<3x256xf32>
    %37 = vector.broadcast %35 : vector<1x256xf32> to vector<3x256xf32>
    %38 = arith.mulf %36, %37 : vector<3x256xf32>
    %c0_26 = arith.constant 0 : index
    %c1_27 = arith.constant 1 : index
    %39 = vector.load %arg3[%c0_26, %c1_27] : memref<3x4xf32, #tpu.memory_space<vmem>>, vector<3x1xf32>
    %c1_28 = arith.constant 1 : index
    %c1_29 = arith.constant 1 : index
    %c0_30 = arith.constant 0 : index
    %40 = vector.load %arg2[%c1_28, %c1_29, %c0_30] : memref<2x4x256xf32, #tpu.memory_space<vmem>>, vector<1x1x256xf32>
    %41 = vector.shape_cast %40 : vector<1x1x256xf32> to vector<1x256xf32>
    %42 = vector.broadcast %39 : vector<3x1xf32> to vector<3x256xf32>
    %43 = vector.broadcast %41 : vector<1x256xf32> to vector<3x256xf32>
    %44 = arith.mulf %42, %43 : vector<3x256xf32>
    %45 = arith.addf %38, %44 : vector<3x256xf32>
    %c0_31 = arith.constant 0 : index
    %c2_32 = arith.constant 2 : index
    %46 = vector.load %arg3[%c0_31, %c2_32] : memref<3x4xf32, #tpu.memory_space<vmem>>, vector<3x1xf32>
    %c1_33 = arith.constant 1 : index
    %c2_34 = arith.constant 2 : index
    %c0_35 = arith.constant 0 : index
    %47 = vector.load %arg2[%c1_33, %c2_34, %c0_35] : memref<2x4x256xf32, #tpu.memory_space<vmem>>, vector<1x1x256xf32>
    %48 = vector.shape_cast %47 : vector<1x1x256xf32> to vector<1x256xf32>
    %49 = vector.broadcast %46 : vector<3x1xf32> to vector<3x256xf32>
    %50 = vector.broadcast %48 : vector<1x256xf32> to vector<3x256xf32>
    %51 = arith.mulf %49, %50 : vector<3x256xf32>
    %52 = arith.addf %45, %51 : vector<3x256xf32>
    %c0_36 = arith.constant 0 : index
    %c3_37 = arith.constant 3 : index
    %53 = vector.load %arg3[%c0_36, %c3_37] : memref<3x4xf32, #tpu.memory_space<vmem>>, vector<3x1xf32>
    %c1_38 = arith.constant 1 : index
    %c3_39 = arith.constant 3 : index
    %c0_40 = arith.constant 0 : index
    %54 = vector.load %arg2[%c1_38, %c3_39, %c0_40] : memref<2x4x256xf32, #tpu.memory_space<vmem>>, vector<1x1x256xf32>
    %55 = vector.shape_cast %54 : vector<1x1x256xf32> to vector<1x256xf32>
    %56 = vector.broadcast %53 : vector<3x1xf32> to vector<3x256xf32>
    %57 = vector.broadcast %55 : vector<1x256xf32> to vector<3x256xf32>
    %58 = arith.mulf %56, %57 : vector<3x256xf32>
    %59 = arith.addf %52, %58 : vector<3x256xf32>
    %60 = vector.broadcast %0 : vector<3x1xf32> to vector<3x256xf32>
    %61 = arith.addf %59, %60 : vector<3x256xf32>
    %c1_41 = arith.constant 1 : index
    %c0_42 = arith.constant 0 : index
    %c0_43 = arith.constant 0 : index
    %62 = vector.load %arg5[%c1_41, %c0_42, %c0_43] : memref<2x3x256xf32, #tpu.memory_space<vmem>>, vector<1x3x256xf32>
    %63 = vector.shape_cast %62 : vector<1x3x256xf32> to vector<3x256xf32>
    %64 = vector.shape_cast %61 : vector<3x256xf32> to vector<1x3x256xf32>
    tpu.vector_store %arg5[%c1_41, %c0_42, %c0_43], %64 {strides = array<i32>} : memref<2x3x256xf32, #tpu.memory_space<vmem>>, vector<1x3x256xf32>,
    return
  }
  func.func @transform_0(%arg0: i32, %arg1: i32) -> (i32, i32, i32) {
    %c0_i32 = arith.constant 0 : i32
    %c0_i32_0 = arith.constant 0 : i32
    return %arg0, %c0_i32, %arg1 : i32, i32, i32
  }
  func.func @transform_1(%arg0: i32, %arg1: i32) -> (i32, i32) {
    %c0_i32 = arith.constant 0 : i32
    %c0_i32_0 = arith.constant 0 : i32
    %c0_i32_1 = arith.constant 0 : i32
    return %c0_i32, %c0_i32_0 : i32, i32
  }
  func.func @transform_2(%arg0: i32, %arg1: i32) -> (i32, i32) {
    %c0_i32 = arith.constant 0 : i32
    %c0_i32_0 = arith.constant 0 : i32
    %c0_i32_1 = arith.constant 0 : i32
    return %c0_i32, %c0_i32_0 : i32, i32
  }
  func.func @transform_3(%arg0: i32, %arg1: i32) -> (i32, i32, i32) {
    %c0_i32 = arith.constant 0 : i32
    %c0_i32_0 = arith.constant 0 : i32
    return %arg0, %c0_i32, %arg1 : i32, i32, i32
  }
}

</mosaic_0001>

<llo_original>
// kernel: tpu_custom_call.1
$region0: #{tpu_custom_call.1}
  #allocation0 [shape = 'u32[]', space=smem, size = 0x4, offset = 0x4, fixed_abs, tag = 'smem constant byte address 0x4 - core index']
  #allocation1 [shape = 'u32[144,128]{1,0:T(1,128)}', space=vmem, size = 0x12000, scoped, tag = 'internal scratch']
  %s0 = inlined_call_operand.hbm [shape: f32[2,4,256], index: 0, kind: input, shape index: {}]
  %s1 = inlined_call_operand.vmem [shape: f32[3,4], index: 1, kind: input, shape index: {}]
  %s2 = inlined_call_operand.vmem [shape: f32[3,1], index: 2, kind: input, shape index: {}]
  %s3 = inlined_call_operand.vmem [shape: f32[2,3,256], index: 3, kind: output, shape index: {}]
  %s4 = sld [smem:[#allocation0]]
  $region26: #{tpu_custom_call.1} parent=0
    _
  %s6 = ssub.s32 1, %s4
  %s7 = scalar_select 0, %s6, %s4
  $region1: #{tpu_custom_call.1} parent=0
    #allocation2 [shape = 'u8[8192]{0}', space=vmem, size = 0x2000, scoped, tag = 'input window, operand 0, single buffered']
    #allocation3 [shape = 's32[1]{0}', space=sflag, size = 0x4, scoped, tag = 'scoped memory for tpu_custom_call.1']
    %8 = vsyncpa [#allocation3], 0
    // Predicated region
    $region2: #{tpu_custom_call.1} parent=1 // pred_check
      _
    $region3: #{tpu_custom_call.1} parent=1 // pred_check_branch
      %10 = sbr.rel (0) target = $region5
    $region4: #{tpu_custom_call.1} parent=1 // pred_region
      %s12 = ssub.s32 256, 256
      %13 = vsyncadd [#allocation3], %s12
      %s14 = sshll.u32 [#allocation2], 4
      %s15 = int_to_ptr.vmem [resolvable:$true] %s14
      %20 = dma.hbm_to_vmem [thread:$0]  %s0, 256, %s15, [#allocation3], 128, 128, 8
    $region5: #{tpu_custom_call.1} parent=1 // pred_fallthru
      _
    // Predicated region
    $region6: #{tpu_custom_call.1} parent=1 // pred_check
      _
    $region7: #{tpu_custom_call.1} parent=1 // pred_check_branch
      %22 = sbr.rel (0) target = $region9
    $region8: #{tpu_custom_call.1} parent=1 // pred_region
      _
    $region9: #{tpu_custom_call.1} parent=1 // pred_fallthru
      _
    // Predicated region
    $region10: #{tpu_custom_call.1} parent=1 // pred_check
      _
    $region11: #{tpu_custom_call.1} parent=1 // pred_check_branch
      %24 = sbr.rel (0) target = $region13
    $region12: #{tpu_custom_call.1} parent=1 // pred_region
      _
    $region13: #{tpu_custom_call.1} parent=1 // pred_fallthru
      _
    // Predicated region
    $region14: #{tpu_custom_call.1} parent=1 // pred_check
      _
    $region15: #{tpu_custom_call.1} parent=1 // pred_check_branch
      %26 = sbr.rel (0) target = $region17
    $region16: #{tpu_custom_call.1} parent=1 // pred_region
      %27 = dma.done [#allocation3], 256
    $region17: #{tpu_custom_call.1} parent=1 // pred_fallthru
      _
    %v28 = vld [vmem:[%s2] sm:$0x7]
    %v29 = vld [vmem:[%s1] sm:$0x7]
    %v30 = vld [vmem:[#allocation2] ss:$4 sm:$0x3]
    %32 = vset.pattern.permute.xlu0 0
    %33 = vperm.xlu0 %32, %v29
    %v34 = vpop.permute.xlu0 %33
    %v37 = vlaneseq
    %v38 = vshrl.u32 %v37, 7
    %v39 = vsub.s32 0, %v38
    %v40 = vrot.slane %v30, %v39
    %v41 = vlaneseq
    %v42 = vshrl.u32 %v41, 7
    %v43 = vsub.s32 1, %v42
    %v44 = vrot.slane %v30, %v43
    %v47 = vmul.f32 %v34, %v40
    %v48 = vmul.f32 %v34, %v44
    %s49 = scalar_lea.vmem [#allocation2], 1
    %v50 = vld [vmem:[%s49] ss:$4 sm:$0x3]
    %51 = vset.pattern.permute.xlu0 1
    %52 = vperm.xlu0 %51, %v29
    %v53 = vpop.permute.xlu0 %52
    %v56 = vlaneseq
    %v57 = vshrl.u32 %v56, 7
    %v58 = vsub.s32 0, %v57
    %v59 = vrot.slane %v50, %v58
    %v60 = vlaneseq
    %v61 = vshrl.u32 %v60, 7
    %v62 = vsub.s32 1, %v61
    %v63 = vrot.slane %v50, %v62
    %v66 = vmul.f32 %v53, %v59
    %v67 = vmul.f32 %v53, %v63
    %v68 = vadd.f32 %v47, %v66
    %v69 = vadd.f32 %v48, %v67
    %s70 = scalar_lea.vmem [#allocation2], 2
    %v71 = vld [vmem:[%s70] ss:$4 sm:$0x3]
    %72 = vset.pattern.permute.xlu0 2
    %73 = vperm.xlu0 %72, %v29
    %v74 = vpop.permute.xlu0 %73
    %v77 = vlaneseq
    %v78 = vshrl.u32 %v77, 7
    %v79 = vsub.s32 0, %v78
    %v80 = vrot.slane %v71, %v79
    %v81 = vlaneseq
    %v82 = vshrl.u32 %v81, 7
    %v83 = vsub.s32 1, %v82
    %v84 = vrot.slane %v71, %v83
    %v87 = vmul.f32 %v74, %v80
    %v88 = vmul.f32 %v74, %v84
    %v89 = vadd.f32 %v68, %v87
    %v90 = vadd.f32 %v69, %v88
    %s91 = scalar_lea.vmem [#allocation2], 3
    %v92 = vld [vmem:[%s91] ss:$4 sm:$0x3]
    %93 = vset.pattern.permute.xlu0 3
    %94 = vperm.xlu0 %93, %v29
    %v95 = vpop.permute.xlu0 %94
    %v98 = vlaneseq
    %v99 = vshrl.u32 %v98, 7
    %v100 = vsub.s32 0, %v99
    %v101 = vrot.slane %v92, %v100
    %v102 = vlaneseq
    %v103 = vshrl.u32 %v102, 7
    %v104 = vsub.s32 1, %v103
    %v105 = vrot.slane %v92, %v104
    %v108 = vmul.f32 %v95, %v101
    %v109 = vmul.f32 %v95, %v105
    %v110 = vadd.f32 %v89, %v108
    %v111 = vadd.f32 %v90, %v109
    %113 = vset.pattern.permute.xlu0 0
    %114 = vperm.xlu0 %113, %v28
    %v115 = vpop.permute.xlu0 %114
    %v117 = vadd.f32 %v110, %v115
    %v118 = vadd.f32 %v111, %v115
    %v121 = vcombine.low %v117, %v118
    %123 = vst [vmem:[%s3] sm:$0x77] %v121
    %v124 = vld [vmem:[%s1] sm:$0x7]
    %s125 = scalar_lea.vmem [#allocation2], 8
    %v126 = vld [vmem:[%s125] ss:$4 sm:$0x3]
    %128 = vset.pattern.permute.xlu0 0
    %129 = vperm.xlu0 %128, %v124
    %v130 = vpop.permute.xlu0 %129
    %v133 = vlaneseq
    %v134 = vshrl.u32 %v133, 7
    %v135 = vsub.s32 0, %v134
    %v136 = vrot.slane %v126, %v135
    %v137 = vlaneseq
    %v138 = vshrl.u32 %v137, 7
    %v139 = vsub.s32 1, %v138
    %v140 = vrot.slane %v126, %v139
    %v143 = vmul.f32 %v130, %v136
    %v144 = vmul.f32 %v130, %v140
    %s145 = scalar_lea.vmem %s125, 1 [#allocation2]
    %v146 = vld [vmem:[%s145] ss:$4 sm:$0x3]
    %147 = vset.pattern.permute.xlu0 1
    %148 = vperm.xlu0 %147, %v124
    %v149 = vpop.permute.xlu0 %148
    %v152 = vlaneseq
    %v153 = vshrl.u32 %v152, 7
    %v154 = vsub.s32 0, %v153
    %v155 = vrot.slane %v146, %v154
    %v156 = vlaneseq
    %v157 = vshrl.u32 %v156, 7
    %v158 = vsub.s32 1, %v157
    %v159 = vrot.slane %v146, %v158
    %v162 = vmul.f32 %v149, %v155
    %v163 = vmul.f32 %v149, %v159
    %v164 = vadd.f32 %v143, %v162
    %v165 = vadd.f32 %v144, %v163
    %s166 = scalar_lea.vmem %s125, 2 [#allocation2]
    %v167 = vld [vmem:[%s166] ss:$4 sm:$0x3]
    %168 = vset.pattern.permute.xlu0 2
    %169 = vperm.xlu0 %168, %v124
    %v170 = vpop.permute.xlu0 %169
    %v173 = vlaneseq
    %v174 = vshrl.u32 %v173, 7
    %v175 = vsub.s32 0, %v174
    %v176 = vrot.slane %v167, %v175
    %v177 = vlaneseq
    %v178 = vshrl.u32 %v177, 7
    %v179 = vsub.s32 1, %v178
    %v180 = vrot.slane %v167, %v179
    %v183 = vmul.f32 %v170, %v176
    %v184 = vmul.f32 %v170, %v180
    %v185 = vadd.f32 %v164, %v183
    %v186 = vadd.f32 %v165, %v184
    %s187 = scalar_lea.vmem %s125, 3 [#allocation2]
    %v188 = vld [vmem:[%s187] ss:$4 sm:$0x3]
    %189 = vset.pattern.permute.xlu0 3
    %190 = vperm.xlu0 %189, %v124
    %v191 = vpop.permute.xlu0 %190
    %v194 = vlaneseq
    %v195 = vshrl.u32 %v194, 7
    %v196 = vsub.s32 0, %v195
    %v197 = vrot.slane %v188, %v196
    %v198 = vlaneseq
    %v199 = vshrl.u32 %v198, 7
    %v200 = vsub.s32 1, %v199
    %v201 = vrot.slane %v188, %v200
    %v204 = vmul.f32 %v191, %v197
    %v205 = vmul.f32 %v191, %v201
    %v206 = vadd.f32 %v185, %v204
    %v207 = vadd.f32 %v186, %v205
    %v208 = vadd.f32 %v206, %v115
    %v209 = vadd.f32 %v207, %v115
    %v212 = vcombine.low %v208, %v209
    %s214 = scalar_lea.vmem %s3, 8
    %215 = vst [vmem:[%s214] sm:$0x77] %v212
    // Predicated region
    $region18: #{tpu_custom_call.1} parent=1 // pred_check
      _
    $region19: #{tpu_custom_call.1} parent=1 // pred_check_branch
      %217 = sbr.rel (0) target = $region21
    $region20: #{tpu_custom_call.1} parent=1 // pred_region
      _
    $region21: #{tpu_custom_call.1} parent=1 // pred_fallthru
      _
    // Predicated region
    $region22: #{tpu_custom_call.1} parent=1 // pred_check
      _
    $region23: #{tpu_custom_call.1} parent=1 // pred_check_branch
      %219 = sbr.rel (0) target = $region25
    $region24: #{tpu_custom_call.1} parent=1 // pred_region
      _
    $region25: #{tpu_custom_call.1} parent=1 // pred_fallthru
      _
    %220 = vsyncpa [#allocation3], 1

</llo_original>
